<compile_context>
chip_gen: v5e
topology: v5e:2x2
jax: 0.10.0
libtpu: 0.0.40
codegen_flags: <defaults>
</compile_context>

<pallas_src>
import functools

import jax
import jax.numpy as jnp
from jax import lax
from jax.experimental import pallas as pl
from jax.experimental.pallas import tpu as pltpu


# ------------------------------ hardware info --------------------------------
def _tpu_generation():
    """Return (device_kind, vmem_capacity_bytes, tensorcores_per_device)."""
    kind = ""
    try:
        kind = jax.devices()[0].device_kind.lower()
    except Exception:
        pass
    vmem_cap = 128 * 1024 * 1024          # v5e / v6e physical VMEM per core
    num_tc = 1
    if "7" in kind:                        # v7x: 64 MiB per TC, 2 TCs per chip
        vmem_cap = 64 * 1024 * 1024
        num_tc = 2
    elif "v4" in kind or "v5p" in kind:    # megacore generations: 2 TCs
        num_tc = 2
    try:                                   # prefer the real query when available
        info = pltpu.get_tpu_info()
        cap = getattr(info, "vmem_capacity_bytes", None)
        if cap:
            vmem_cap = int(cap)
    except Exception:
        pass
    return kind, vmem_cap, num_tc


_KIND, _VMEM_CAP, _NUM_TC = _tpu_generation()


# ------------------------------ tiling helpers --------------------------------
def _round_up(x, m):
    return ((x + m - 1) // m) * m


def _sublane_multiple(dtype):
    return {4: 8, 2: 16, 1: 32}.get(jnp.dtype(dtype).itemsize, 8)


def _balanced_tile(dim, target, multiple):
    """Largest tile <= ~target splitting `dim` into near-equal aligned blocks."""
    dim_r = _round_up(max(dim, 1), multiple)
    if dim_r <= target:
        return dim_r
    nblocks = -(-dim_r // target)
    return _round_up(-(-dim_r // nblocks), multiple)


def _tile_targets(dtype):
    """(tm, tn, tk) targets; bf16/int8 get bigger tiles (half the bytes)."""
    if jnp.dtype(dtype).itemsize <= 2:
        return 1024, 1024, 512
    return 512, 512, 512


def _vmem_footprint(tm, tn, tk, in_bytes, out_bytes, add_bias):
    x = 2 * tm * tk * in_bytes          # double-buffered X tile
    w = 2 * tk * tn * in_bytes          # double-buffered W tile
    b = 2 * tn * in_bytes if add_bias else 0
    o = 2 * tm * tn * out_bytes         # double-buffered out tile
    acc = tm * tn * 4                   # f32 accumulator scratch
    return x + w + b + o + acc


# ----------------------------- Pallas kernel ---------------------------------
def _linear_kernel(*refs, add_bias):
    """One (tm, tn) output tile; grid axis 2 reduces over K.

    refs = (x_ref, w_ref[, b_ref], o_ref, acc_ref)
      x_ref: (tm, tk)   activation tile
      w_ref: (tk, tn)   weight tile, pre-transposed (K, N): MXU-native, no vxpose
      b_ref: (1, tn)    bias tile (only when add_bias)
    """
    if add_bias:
        x_ref, w_ref, b_ref, o_ref, acc_ref = refs
    else:
        x_ref, w_ref, o_ref, acc_ref = refs
        b_ref = None

    k = pl.program_id(2)

    @pl.when(k == 0)
    def _():
        if add_bias:
            # Fold the bias into the accumulator init: no epilogue VPU add.
            acc_ref[...] = jnp.broadcast_to(
                b_ref[...].astype(jnp.float32), acc_ref.shape)
        else:
            acc_ref[...] = jnp.zeros_like(acc_ref)

    # Canonical (tm,tk)@(tk,tn) contraction on the MXU with f32 accumulation.
    acc_ref[...] += jnp.dot(x_ref[...], w_ref[...],
                            preferred_element_type=jnp.float32)

    @pl.when(k == pl.num_programs(2) - 1)
    def _():
        o_ref[...] = acc_ref[...].astype(o_ref.dtype)


def _linear_pallas(x2d, weight_t, bias_p, add_bias, tn, tk, M, K, N):
    """x2d: (M, K); weight_t: (Kp, Np) pre-padded; bias_p: (1, Np) -> (M, N)."""
    Kp, Np = weight_t.shape
    dtype = weight_t.dtype
    in_bytes = jnp.dtype(dtype).itemsize
    out_bytes = in_bytes
    mult_m = _sublane_multiple(dtype)
    tm_target, _, _ = _tile_targets(dtype)
    tm = _balanced_tile(M, tm_target, mult_m)

    # Megacore: only split tn when there actually are 2 TensorCores to feed
    # and the problem would otherwise be a single parallel block.
    if _NUM_TC >= 2 and -(-M // tm) == 1 and Np // tn == 1 and tn % 256 == 0:
        tn //= 2

    # Fit the double-buffered working set into the per-generation VMEM budget.
    cap = (_VMEM_CAP * 3) // 4
    while _vmem_footprint(tm, tn, tk, in_bytes, out_bytes, add_bias) > cap:
        if tm > mult_m:
            tm = max(mult_m, _round_up(tm // 2, mult_m))
        elif tk % 256 == 0:
            tk //= 2               # stays a 128-multiple and still divides Kp
        elif tn % 256 == 0:
            tn //= 2               # stays a 128-multiple and still divides Np
        else:
            break

    Mp = _round_up(M, tm)
    # Only the activation is padded per call (weight/bias were padded at init).
    x_p = x2d
    if Mp != M or Kp != K:
        x_p = jnp.pad(x2d, ((0, Mp - M), (0, Kp - K)))

    in_specs = [
        pl.BlockSpec((tm, tk), lambda i, j, k: (i, k)),   # X tile
        pl.BlockSpec((tk, tn), lambda i, j, k: (k, j)),   # W^T tile (K, N)
    ]
    operands = [x_p, weight_t]
    if add_bias:
        in_specs.append(pl.BlockSpec((1, tn), lambda i, j, k: (0, j)))
        operands.append(bias_p)

    kernel = functools.partial(_linear_kernel, add_bias=add_bias)

    needed = _vmem_footprint(tm, tn, tk, in_bytes, out_bytes, add_bias)
    vmem_limit = int(min(cap, max(needed + needed // 2, 32 * 1024 * 1024)))

    out = pl.pallas_call(
        kernel,
        out_shape=jax.ShapeDtypeStruct((Mp, Np), dtype),
        grid_spec=pltpu.PrefetchScalarGridSpec(
            num_scalar_prefetch=0,
            grid=(Mp // tm, Np // tn, Kp // tk),
            in_specs=in_specs,
            out_specs=pl.BlockSpec((tm, tn), lambda i, j, k: (i, j)),
            scratch_shapes=[pltpu.VMEM((tm, tn), jnp.float32)],
        ),
        compiler_params=pltpu.CompilerParams(
            dimension_semantics=("parallel", "parallel", "arbitrary"),
            vmem_limit_bytes=vmem_limit,
        ),
    )(*operands)

    if Mp != M or Np != N:
        out = out[:M, :N]
    return out


_MIN_PALLAS_FLOPS = 1 << 20  # below ~1 MFLOP pallas_call overhead dominates


# --------------------------- module equivalent --------------------------------
class ColumnParallelLinear:
    """JAX/Pallas equivalent of Megatron's ColumnParallelLinear (world_size=1).

    The weight is kept torch-style as self.weight (N, K) for reference, but the
    kernel consumes self.weight_t (Kp, Np): pre-transposed and zero-padded once
    at init so the per-call path never re-lays-out or re-pads the parameter.
    bf16 params are supported (MXU peak path); accumulation stays in f32.
    """

    def __init__(self, input_size, output_size, bias=True, gather_output=True,
                 skip_bias_add=False, key=None, dtype=jnp.float32):
        self.input_size = input_size
        self.output_size = output_size
        self.gather_output = gather_output
        self.skip_bias_add = skip_bias_add
        world_size = 1  # single tensor-model-parallel rank
        self.output_size_per_partition = output_size // world_size
        self.params_dtype = jnp.dtype(dtype)

        if key is None:
            key = jax.random.PRNGKey(0)
        # xavier_normal_: std = sqrt(2 / (fan_in + fan_out)); weight shape
        # matches torch: (output_size_per_partition, input_size).
        std = (2.0 / (input_size + output_size)) ** 0.5
        w = std * jax.random.normal(
            key, (self.output_size_per_partition, input_size), dtype=jnp.float32)
        self.weight = w.astype(dtype)                       # torch-style (N, K)
        self.has_bias = bias
        # bias always zero-initialized in the reference module
        self.bias = (jnp.zeros((self.output_size_per_partition,), dtype=dtype)
                     if bias else None)

        # ---- init-time tiling / padding over the weight's (K, N) axes -------
        K, N = input_size, self.output_size_per_partition
        _, tn_t, tk_t = _tile_targets(dtype)
        self.tn = _balanced_tile(N, tn_t, 128)
        self.tk = _balanced_tile(K, tk_t, 128)
        self.Np = _round_up(N, self.tn)
        self.Kp = _round_up(K, self.tk)
        # Pre-transposed, zero-padded weight (Kp, Np): one-time layout cost.
        self.weight_t = (jnp.zeros((self.Kp, self.Np), dtype=dtype)
                         .at[:K, :N].set(self.weight.T))
        self.bias_p = (jnp.zeros((1, self.Np), dtype=dtype)
                       .at[0, :N].set(self.bias)) if bias else None

    def _forward_2d(self, x2d, add_bias, force_pallas):
        M, K = x2d.shape
        N = self.output_size_per_partition
        if not force_pallas and 2 * M * N * K < _MIN_PALLAS_FLOPS:
            # Tiny problem: a plain XLA dot is strictly faster than kernel launch.
            out = jnp.dot(x2d, self.weight.T, preferred_element_type=jnp.float32)
            if add_bias:
                out = out + self.bias.astype(jnp.float32)
            return out.astype(x2d.dtype)
        return _linear_pallas(x2d, self.weight_t,
                              self.bias_p if add_bias else None,
                              add_bias, self.tn, self.tk, M, K, N)

    def __call__(self, input_, *, force_pallas=False):
        # copy_to_tensor_model_parallel_region: identity for world_size=1
        input_parallel = input_

        add_bias = self.has_bias and not self.skip_bias_add

        lead_shape = input_parallel.shape[:-1]
        x2d = input_parallel.reshape(-1, self.input_size)
        if x2d.dtype != self.params_dtype:
            x2d = x2d.astype(self.params_dtype)
        out2d = self._forward_2d(x2d, add_bias, force_pallas)
        output_parallel = out2d.reshape(*lead_shape, self.output_size_per_partition)

        # gather_from_tensor_model_parallel_region: identity for world_size=1
        # TODO(synk): multi-device all-gather over the partition axis not modeled.
        output = output_parallel

        output_bias = self.bias if (self.has_bias and self.skip_bias_add) else None
        return output, output_bias


# --------------------------------- main ---------------------------------------
if __name__ == "__main__":
    key = jax.random.PRNGKey(0)
    k_w1, k_w2, k_x1, k_x2 = jax.random.split(key, 4)

    # ---- small demo shape (f32, bias added, forced through the Pallas path) --
    batch, seq, hidden, out_features = 2, 8, 32, 64
    x = jax.random.normal(k_x1, (batch, seq, hidden), dtype=jnp.float32)

    layer = ColumnParallelLinear(hidden, out_features, bias=True,
                                 gather_output=True, skip_bias_add=False,
                                 key=k_w1, dtype=jnp.float32)
    out, out_bias = layer(x, force_pallas=True)
    out = jax.block_until_ready(out)

    ref = jnp.einsum("bsk,nk->bsn", x, layer.weight,
                     precision=lax.Precision.HIGHEST) + layer.bias
    assert out.shape == (batch, seq, out_features)
    assert out_bias is None
    assert jnp.allclose(out, ref, atol=2e-2, rtol=2e-2), "small-shape mismatch"

    # ---- medium shape: bf16 params (peak MXU path), skip_bias_add, no-bias
    #      kernel path, non-128-multiple K, pre-transposed weight ---------------
    b2, s2, hid2, out2 = 4, 96, 384, 512
    x2 = jax.random.normal(k_x2, (b2, s2, hid2), dtype=jnp.float32)
    layer2 = ColumnParallelLinear(hid2, out2, bias=True, gather_output=True,
                                  skip_bias_add=True, key=k_w2,
                                  dtype=jnp.bfloat16)
    y2, y2_bias = layer2(x2)
    y2 = jax.block_until_ready(y2)

    # Reference in f32 from the same bf16-cast operands (isolates output rounding).
    ref2 = jnp.einsum("bsk,nk->bsn",
                      x2.astype(jnp.bfloat16).astype(jnp.float32),
                      layer2.weight.astype(jnp.float32),
                      precision=lax.Precision.HIGHEST)
    assert y2.shape == (b2, s2, out2)
    assert y2_bias is not None and y2_bias.shape == (out2,)
    assert jnp.allclose(y2.astype(jnp.float32), ref2,
                        atol=2e-2, rtol=2e-2), "medium-shape mismatch"

    print("KERNEL_OK")
</pallas_src>

<mosaic_0001>
module attributes {stable_mosaic.version = 11 : i64} {
  func.func @_linear_kernel(%arg0: i32, %arg1: i32, %arg2: i32, %arg3: memref<16x128xf32, #tpu.memory_space<vmem>>, %arg4: memref<128x128xf32, #tpu.memory_space<vmem>>, %arg5: memref<1x128xf32, #tpu.memory_space<vmem>>, %arg6: memref<16x128xf32, #tpu.memory_space<vmem>>, %arg7: memref<16x128xf32, #tpu.memory_space<vmem>>) attributes {dimension_semantics = [#tpu.dimension_semantics<parallel>, #tpu.dimension_semantics<parallel>, #tpu.dimension_semantics<arbitrary>], iteration_bounds = array<i64: 1, 1, 1>, scalar_prefetch = 0 : i64, scratch_operands = 1 : i64, tpu.core_type = #tpu.core_type<tc>, window_params = [{transform_indices = @transform_0, window_bounds = array<i64: 16, 128>}, {transform_indices = @transform_1, window_bounds = array<i64: 128, 128>}, {transform_indices = @transform_2, window_bounds = array<i64: 1, 128>}, {transform_indices = @transform_3, window_bounds = array<i64: 16, 128>}]} {
    %c0_i32 = arith.constant 0 : i32
    %0 = arith.cmpi eq, %arg2, %c0_i32 : i32
    %1 = arith.extui %0 : i1 to i32
    %c0_i32_0 = arith.constant 0 : i32
    %2 = arith.cmpi ne, %1, %c0_i32_0 : i32
    scf.if %2 {
      %c0_10 = arith.constant 0 : index
      %c0_11 = arith.constant 0 : index
      %12 = vector.load %arg5[%c0_10, %c0_11] : memref<1x128xf32, #tpu.memory_space<vmem>>, vector<1x128xf32>
      %13 = vector.shape_cast %12 : vector<1x128xf32> to vector<1x128xf32>
      %14 = vector.broadcast %13 : vector<1x128xf32> to vector<16x128xf32>
      %c0_12 = arith.constant 0 : index
      %c0_13 = arith.constant 0 : index
      %15 = vector.load %arg7[%c0_12, %c0_13] : memref<16x128xf32, #tpu.memory_space<vmem>>, vector<16x128xf32>
      tpu.vector_store %arg7[%c0_12, %c0_13], %14 {strides = array<i32>} : memref<16x128xf32, #tpu.memory_space<vmem>>, vector<16x128xf32>,
    } else {
    }
    %c0 = arith.constant 0 : index
    %c0_1 = arith.constant 0 : index
    %3 = vector.load %arg7[%c0, %c0_1] : memref<16x128xf32, #tpu.memory_space<vmem>>, vector<16x128xf32>
    %c0_2 = arith.constant 0 : index
    %c0_3 = arith.constant 0 : index
    %4 = vector.load %arg3[%c0_2, %c0_3] : memref<16x128xf32, #tpu.memory_space<vmem>>, vector<16x128xf32>
    %c0_4 = arith.constant 0 : index
    %c0_5 = arith.constant 0 : index
    %5 = vector.load %arg4[%c0_4, %c0_5] : memref<128x128xf32, #tpu.memory_space<vmem>>, vector<128x128xf32>
    %cst = arith.constant dense<0.000000e+00> : vector<16x128xf32>
    %6 = tpu.matmul %4, %5, %cst {dimension_numbers = #tpu.dot_dimension_numbers<[1], [0], [0], [1], [0, 0, 1, 1], [], []>} : vector<16x128xf32>, vector<128x128xf32>, vector<16x128xf32> -> vector<16x128xf32>
    %7 = arith.addf %3, %6 : vector<16x128xf32>
    %c0_6 = arith.constant 0 : index
    %c0_7 = arith.constant 0 : index
    %8 = vector.load %arg7[%c0_6, %c0_7] : memref<16x128xf32, #tpu.memory_space<vmem>>, vector<16x128xf32>
    tpu.vector_store %arg7[%c0_6, %c0_7], %7 {strides = array<i32>} : memref<16x128xf32, #tpu.memory_space<vmem>>, vector<16x128xf32>,
    %c0_i32_8 = arith.constant 0 : i32
    %9 = arith.cmpi eq, %arg2, %c0_i32_8 : i32
    %10 = arith.extui %9 : i1 to i32
    %c0_i32_9 = arith.constant 0 : i32
    %11 = arith.cmpi ne, %10, %c0_i32_9 : i32
    scf.if %11 {
      %c0_10 = arith.constant 0 : index
      %c0_11 = arith.constant 0 : index
      %12 = vector.load %arg7[%c0_10, %c0_11] : memref<16x128xf32, #tpu.memory_space<vmem>>, vector<16x128xf32>
      %c0_12 = arith.constant 0 : index
      %c0_13 = arith.constant 0 : index
      %13 = vector.load %arg6[%c0_12, %c0_13] : memref<16x128xf32, #tpu.memory_space<vmem>>, vector<16x128xf32>
      tpu.vector_store %arg6[%c0_12, %c0_13], %12 {strides = array<i32>} : memref<16x128xf32, #tpu.memory_space<vmem>>, vector<16x128xf32>,
    } else {
    }
    return
  }
  func.func @transform_0(%arg0: i32, %arg1: i32, %arg2: i32) -> (i32, i32) {
    %c0_i32 = arith.constant 0 : i32
    return %arg0, %arg2 : i32, i32
  }
  func.func @transform_1(%arg0: i32, %arg1: i32, %arg2: i32) -> (i32, i32) {
    %c0_i32 = arith.constant 0 : i32
    return %arg2, %arg1 : i32, i32
  }
  func.func @transform_2(%arg0: i32, %arg1: i32, %arg2: i32) -> (i32, i32) {
    %c0_i32 = arith.constant 0 : i32
    %c0_i32_0 = arith.constant 0 : i32
    return %c0_i32, %arg1 : i32, i32
  }
  func.func @transform_3(%arg0: i32, %arg1: i32, %arg2: i32) -> (i32, i32) {
    %c0_i32 = arith.constant 0 : i32
    return %arg0, %arg1 : i32, i32
  }
}

</mosaic_0001>

<llo_original>
// kernel: tpu_custom_call.1
$region0: #{tpu_custom_call.1}
  #allocation0 [shape = 'u32[]', space=smem, size = 0x4, offset = 0x4, fixed_abs, tag = 'smem constant byte address 0x4 - core index']
  #allocation1 [shape = 'u32[72,128]{1,0:T(1,128)}', space=vmem, size = 0x9000, scoped, tag = 'internal scratch']
  #allocation2 [shape = 'f32[16,128]{1,0:T(8,128)}', space=vmem, size = 0x2000, scoped, tag = 'scratch operand']
  %s0 = inlined_call_operand.hbm [shape: f32[16,128], index: 0, kind: input, shape index: {}]
  %s1 = inlined_call_operand.hbm [shape: f32[128,128], index: 1, kind: input, shape index: {}]
  %s2 = inlined_call_operand.vmem [shape: f32[1,128], index: 2, kind: input, shape index: {}]
  %s3 = inlined_call_operand.hbm [shape: f32[16,128], index: 3, kind: output, shape index: {}]
  %s4 = sld [smem:[#allocation0]]
  $region38: #{tpu_custom_call.1} parent=0
    _
  %s6 = ssub.s32 1, %s4
  %s7 = scalar_select 0, %s6, %s4
  $region1: #{tpu_custom_call.1} parent=0
    #allocation3 [shape = 'u8[8192]{0}', space=vmem, size = 0x2000, scoped, tag = 'input window, operand 0, single buffered']
    #allocation4 [shape = 's32[1]{0}', space=sflag, size = 0x4, scoped, tag = 'scoped memory for tpu_custom_call.1']
    #allocation5 [shape = 's32[1]{0}', space=sflag, size = 0x4, scoped, tag = 'scoped memory for tpu_custom_call.1']
    #allocation6 [shape = 'u8[65536]{0}', space=vmem, size = 0x10000, scoped, tag = 'input window, operand 1, single buffered']
    #allocation7 [shape = 's32[1]{0}', space=sflag, size = 0x4, scoped, tag = 'scoped memory for tpu_custom_call.1']
    #allocation8 [shape = 'u8[8192]{0}', space=vmem, size = 0x2000, scoped, tag = 'output window, operand 0, single buffered']
    %8 = vsyncpa [#allocation4], 0
    %9 = vsyncpa [#allocation7], 0
    %10 = vsyncpa [#allocation5], 0
    // Predicated region
    $region2: #{tpu_custom_call.1} parent=1 // pred_check
      _
    $region3: #{tpu_custom_call.1} parent=1 // pred_check_branch
      %12 = sbr.rel (0) target = $region5
    $region4: #{tpu_custom_call.1} parent=1 // pred_region
      %14 = vsyncadd [#allocation4], 0
      %s15 = sshll.u32 %s0, 4
      %s16 = int_to_ptr.hbm [resolvable:$true] %s15
      %s17 = sshll.u32 [#allocation3], 4
      %s18 = int_to_ptr.vmem [resolvable:$true] %s17
      %23 = dma.hbm_to_vmem [thread:$0]  %s16, 256, %s18, [#allocation4], 128, 128, 8
    $region5: #{tpu_custom_call.1} parent=1 // pred_fallthru
      _
    // Predicated region
    $region6: #{tpu_custom_call.1} parent=1 // pred_check
      _
    $region7: #{tpu_custom_call.1} parent=1 // pred_check_branch
      %25 = sbr.rel (0) target = $region9
    $region8: #{tpu_custom_call.1} parent=1 // pred_region
      %27 = vsyncadd [#allocation7], 0
      %s28 = sshll.u32 %s1, 4
      %s29 = int_to_ptr.hbm [resolvable:$true] %s28
      %s30 = sshll.u32 [#allocation6], 4
      %s31 = int_to_ptr.vmem [resolvable:$true] %s30
      %36 = dma.hbm_to_vmem [thread:$0]  %s29, 2048, %s31, [#allocation7], 128, 128, 8
    $region9: #{tpu_custom_call.1} parent=1 // pred_fallthru
      _
    // Predicated region
    $region10: #{tpu_custom_call.1} parent=1 // pred_check
      _
    $region11: #{tpu_custom_call.1} parent=1 // pred_check_branch
      %38 = sbr.rel (0) target = $region13
    $region12: #{tpu_custom_call.1} parent=1 // pred_region
      _
    $region13: #{tpu_custom_call.1} parent=1 // pred_fallthru
      _
    // Predicated region
    $region14: #{tpu_custom_call.1} parent=1 // pred_check
      _
    $region15: #{tpu_custom_call.1} parent=1 // pred_check_branch
      %40 = sbr.rel (0) target = $region17
    $region16: #{tpu_custom_call.1} parent=1 // pred_region
      %42 = dma.done [#allocation4], 256
    $region17: #{tpu_custom_call.1} parent=1 // pred_fallthru
      _
    // Predicated region
    $region18: #{tpu_custom_call.1} parent=1 // pred_check
      _
    $region19: #{tpu_custom_call.1} parent=1 // pred_check_branch
      %44 = sbr.rel (0) target = $region21
    $region20: #{tpu_custom_call.1} parent=1 // pred_region
      %46 = dma.done [#allocation7], 2048
    $region21: #{tpu_custom_call.1} parent=1 // pred_fallthru
      _
    %p47 = scmp.eq.s32.totalorder 0, 0
    // Predicated region
    $region22: #{tpu_custom_call.1} parent=1 // pred_check
      %p48 = pneg %p47
    $region23: #{tpu_custom_call.1} parent=1 // pred_check_branch
      %50 = sbr.rel (%p48) target = $region25
    $region24: #{tpu_custom_call.1} parent=1 // pred_region
      %v51 = vld [vmem:[%s2] sm:$0x1]
      %v53 = vperm.slane %v51, 0
      %55 = vst [vmem:[#allocation2] sm:$0xff] %v53
      %56 = vst [vmem:[#allocation2 + $0x8] sm:$0xff] %v53
    $region25: #{tpu_custom_call.1} parent=1 // pred_fallthru
      _
    %v57 = vld [vmem:[#allocation2] sm:$0xff]
    %v58 = vld [vmem:[#allocation2 + $0x8] sm:$0xff]
    %v59 = vld [vmem:[#allocation3] sm:$0xff]
    %v60 = vld [vmem:[#allocation3 + $0x8] sm:$0xff]
    %v61 = vld [vmem:[#allocation6] sm:$0xff]
    %v62 = vld [vmem:[#allocation6 + $0x8] sm:$0xff]
    %v63 = vld [vmem:[#allocation6 + $0x10] sm:$0xff]
    %v64 = vld [vmem:[#allocation6 + $0x18] sm:$0xff]
    %v65 = vld [vmem:[#allocation6 + $0x20] sm:$0xff]
    %v66 = vld [vmem:[#allocation6 + $0x28] sm:$0xff]
    %v67 = vld [vmem:[#allocation6 + $0x30] sm:$0xff]
    %v68 = vld [vmem:[#allocation6 + $0x38] sm:$0xff]
    %v69 = vld [vmem:[#allocation6 + $0x40] sm:$0xff]
    %v70 = vld [vmem:[#allocation6 + $0x48] sm:$0xff]
    %v71 = vld [vmem:[#allocation6 + $0x50] sm:$0xff]
    %v72 = vld [vmem:[#allocation6 + $0x58] sm:$0xff]
    %v73 = vld [vmem:[#allocation6 + $0x60] sm:$0xff]
    %v74 = vld [vmem:[#allocation6 + $0x68] sm:$0xff]
    %v75 = vld [vmem:[#allocation6 + $0x70] sm:$0xff]
    %v76 = vld [vmem:[#allocation6 + $0x78] sm:$0xff]
    %77 = vmatpush.msra.mxu0 %v76
    %78 = vmatpush.msra.mxu0 %v75
    %79 = vmatpush.msra.mxu0 %v74
    %80 = vmatpush.msra.mxu0 %v73
    %81 = vmatpush.msra.mxu0 %v72
    %82 = vmatpush.msra.mxu0 %v71
    %83 = vmatpush.msra.mxu0 %v70
    %84 = vmatpush.msra.mxu0 %v69
    %85 = vmatpush.msra.mxu0 %v68
    %86 = vmatpush.msra.mxu0 %v67
    %87 = vmatpush.msra.mxu0 %v66
    %88 = vmatpush.msra.mxu0 %v65
    %89 = vmatpush.msra.mxu0 %v64
    %90 = vmatpush.msra.mxu0 %v63
    %91 = vmatpush.msra.mxu0 %v62
    %92 = vmatpush.msra.mxu0 %v61
    %93 = vmatmul.f32.gmra.mxu0 %v59
    %v94 = vpop.f32.mrf.mxu0
    %v95 = vadd.f32 0.0, %v94
    %96 = vmatmul.f32.gmra.mxu0 %v60
    %v97 = vpop.f32.mrf.mxu0
    %v98 = vadd.f32 0.0, %v97
    %99 = vdwg.mxu0
    %v100 = vadd.f32 %v57, %v95
    %v101 = vadd.f32 %v58, %v98
    %102 = vst [vmem:[#allocation2] sm:$0xff] %v100
    %103 = vst [vmem:[#allocation2 + $0x8] sm:$0xff] %v101
    // Predicated region
    $region26: #{tpu_custom_call.1} parent=1 // pred_check
      %p104 = pneg %p47
    $region27: #{tpu_custom_call.1} parent=1 // pred_check_branch
      %106 = sbr.rel (%p104) target = $region29
    $region28: #{tpu_custom_call.1} parent=1 // pred_region
      %v107 = vld [vmem:[#allocation2] sm:$0xff]
      %v108 = vld [vmem:[#allocation2 + $0x8] sm:$0xff]
      %109 = vst [vmem:[#allocation8] sm:$0xff] %v107
      %110 = vst [vmem:[#allocation8 + $0x8] sm:$0xff] %v108
    $region29: #{tpu_custom_call.1} parent=1 // pred_fallthru
      _
    // Predicated region
    $region30: #{tpu_custom_call.1} parent=1 // pred_check
      _
    $region31: #{tpu_custom_call.1} parent=1 // pred_check_branch
      %112 = sbr.rel (0) target = $region33
    $region32: #{tpu_custom_call.1} parent=1 // pred_region
      %114 = vsyncadd [#allocation5], 0
      %s115 = sshll.u32 [#allocation8], 4
      %s116 = int_to_ptr.vmem [resolvable:$true] %s115
      %s117 = sshll.u32 %s3, 4
      %s118 = int_to_ptr.hbm [resolvable:$true] %s117
      %123 = dma.vmem_to_hbm [thread:$0]  %s116, 256, %s118, [#allocation5], 128, 128, 8
    $region33: #{tpu_custom_call.1} parent=1 // pred_fallthru
      _
    // Predicated region
    $region34: #{tpu_custom_call.1} parent=1 // pred_check
      _
    $region35: #{tpu_custom_call.1} parent=1 // pred_check_branch
      %125 = sbr.rel (0) target = $region37
    $region36: #{tpu_custom_call.1} parent=1 // pred_region
      %127 = dma.done [#allocation5], 256
    $region37: #{tpu_custom_call.1} parent=1 // pred_fallthru
      _
    %128 = vsyncpa [#allocation4], 1
    %129 = vsyncpa [#allocation7], 1
    %130 = vsyncpa [#allocation5], 1

</llo_original>
